<compile_context>
chip_gen: v5e
topology: v5e:2x2
jax: 0.10.0
libtpu: 0.0.40
codegen_flags: <defaults>
</compile_context>

<pallas_src>
import jax
import jax.numpy as jnp
from jax.experimental import pallas as pl
from jax.experimental.pallas import tpu as pltpu

DIM1, DIM2, FINALDIM, NCLASS = 128, 64, 64, 2
BN_EPS = 1e-5
LANE, SUBLANE = 128, 8


# ----------------------------------------------------------------------------
# Kernel
# ----------------------------------------------------------------------------
def _disc_kernel(x_ref,
                 w1_ref, b1_ref,
                 w2_ref, b2_ref,
                 w3_ref, b3_ref,
                 wd_ref, bd_ref,
                 o_ref):
    cdt = w1_ref.dtype  # compute dtype for MXU operands (f32 or bf16)

    # Layer 1: Linear + ReLU (BN1 folded into W2/b2).  x cast in-VMEM, not HBM.
    h = jnp.dot(x_ref[...].astype(cdt), w1_ref[...],
                preferred_element_type=jnp.float32)
    h = jnp.maximum(h + b1_ref[...], 0.0)

    # Layer 2: Linear(+folded BN1) + ReLU.  W2 zero-padded to (128,128), so the
    # padded lanes stay exactly zero after ReLU.
    h = jnp.dot(h.astype(cdt), w2_ref[...], preferred_element_type=jnp.float32)
    h = jnp.maximum(h + b2_ref[...], 0.0)

    # Layer 3: Linear(+folded BN2) + ReLU.  Also zero-padded to (128,128).
    h = jnp.dot(h.astype(cdt), w3_ref[...], preferred_element_type=jnp.float32)
    h = jnp.maximum(h + b3_ref[...], 0.0)

    # Predict: 2-class softmax == sigmoid of the logit difference.  Computed in
    # transposed form so batch lands on the 128-lane axis (lane-dense output):
    #   d_t[0, j] = sum_f w_d[f] * h[j, f] + b_d
    d_t = jnp.dot(wd_ref[...], h.T, preferred_element_type=jnp.float32)
    d_t = d_t + bd_ref[...]                       # (1, tb)
    p1 = 1.0 / (1.0 + jnp.exp(-d_t))              # softmax(...)[:, 1]
    o_ref[...] = jnp.concatenate([1.0 - p1, p1], axis=0).astype(o_ref.dtype)


# ----------------------------------------------------------------------------
# One-time parameter preprocessing (call once, reuse across forwards)
# ----------------------------------------------------------------------------
def prepare_params(params, compute_dtype=jnp.float32):
    """Fold eval-mode BatchNorms into the following Linear layers, transpose
    PyTorch (out,in) weights to (in,out), zero-pad the 64-wide layers to 128
    lanes, reduce the final Linear+Softmax to one logit-difference row, and
    cast the matmul operands to `compute_dtype` (epilogue params stay f32)."""
    f32 = jnp.float32

    def fold(w_t, b, gamma, beta, mean, var):
        # BN(h) = (h - mean) * scale + beta, then Linear:  BN(h) @ W_t + b
        #   == h @ (scale[:,None] * W_t) + (b + (beta - mean*scale) @ W_t)
        scale = gamma.astype(f32) / jnp.sqrt(var.astype(f32) + BN_EPS)
        shift = beta.astype(f32) - mean.astype(f32) * scale
        return scale[:, None] * w_t, b + shift @ w_t

    w1t = params["w1"].T.astype(f32)                               # (in, 128)
    b1 = params["b1"].astype(f32)
    w2t, b2 = fold(params["w2"].T.astype(f32), params["b2"].astype(f32),
                   params["bn1_gamma"], params["bn1_beta"],
                   params["bn1_mean"], params["bn1_var"])          # (128, 64)
    w3t, b3 = fold(params["w3"].T.astype(f32), params["b3"].astype(f32),
                   params["bn2_gamma"], params["bn2_beta"],
                   params["bn2_mean"], params["bn2_var"])          # (64, 64)
    w4t, b4 = fold(params["w4"].T.astype(f32), params["b4"].astype(f32),
                   params["bn2_gamma"], params["bn2_beta"],
                   params["bn2_mean"], params["bn2_var"])          # (64, 2)

    # Zero-pad the narrow layers to 128 lanes (dense vregs, 128x128 MXU tiles).
    w2p = jnp.zeros((DIM1, DIM1), f32).at[:, :DIM2].set(w2t)
    b2p = jnp.zeros((DIM1,), f32).at[:DIM2].set(b2)
    w3p = jnp.zeros((DIM1, DIM1), f32).at[:DIM2, :DIM2].set(w3t)
    b3p = jnp.zeros((DIM1,), f32).at[:FINALDIM].set(b3)
    # Final layer + softmax -> single logit-difference row (kept f32).
    wd = jnp.zeros((1, DIM1), f32).at[0, :FINALDIM].set(w4t[:, 1] - w4t[:, 0])
    bd = jnp.asarray([[b4[1] - b4[0]]], f32)

    row = lambda v: v.reshape(1, -1).astype(f32)
    return {
        "w1": w1t.astype(compute_dtype), "b1": row(b1),
        "w2": w2p.astype(compute_dtype), "b2": row(b2p),
        "w3": w3p.astype(compute_dtype), "b3": row(b3p),
        "wd": wd, "bd": bd,     # final matvec + sigmoid epilogue run in f32
    }


# ----------------------------------------------------------------------------
# Tile sizing against the true (lane/sublane-padded) VMEM footprint
# ----------------------------------------------------------------------------
def _round_up(n, m):
    return ((n + m - 1) // m) * m


def _cdiv(a, b):
    return (a + b - 1) // b


def _pick_batch_tile(batch, in_len, x_dtype, w_dtype, max_tile,
                     vmem_budget_bytes):
    x_isz = jnp.dtype(x_dtype).itemsize
    w_isz = jnp.dtype(w_dtype).itemsize
    lane = lambda n: _round_up(max(n, 1), LANE)
    sub = lambda n: _round_up(max(n, 1), SUBLANE)

    # Batch-independent VMEM: weights/biases (constant blocks; counted with 2
    # buffers to stay conservative).
    fixed = 2 * (sub(in_len) * lane(DIM1) * w_isz          # w1 (in_len, 128)
                 + 2 * DIM1 * DIM1 * w_isz                 # w2, w3 (128, 128)
                 + sub(1) * lane(DIM1) * 4                 # wd (f32)
                 + 3 * sub(1) * lane(DIM1) * 4             # b1, b2, b3 (f32)
                 + sub(1) * lane(1) * 4)                   # bd (f32)

    # Per-batch-row VMEM, lane/sublane padded:
    #   double-buffered x block + double-buffered (2, tb) output block
    #   + ~3 live f32 activation rows (compiler scratch / spill headroom).
    per_row = (2 * lane(in_len) * x_isz
               + 2 * sub(NCLASS) * 4
               + 3 * lane(DIM1) * 4)

    avail = max(int(vmem_budget_bytes) - fixed, per_row * 128)
    tb = avail // per_row
    # Cap: user max, and never exceed the 128-aligned batch extent (so a block
    # is only ever partial at the trailing edge, never wider than the array).
    tb = min(tb, int(max_tile), max(128, (batch // 128) * 128))
    if batch > 128:
        # Guarantee >= 2 grid steps so the "parallel" batch axis can shard
        # across v7x's two TensorCores and the DMA pipeline has steps to hide.
        tb = min(tb, _round_up(_cdiv(batch, 2), 128))
    tb = max(128, (tb // 128) * 128)          # multiple of 128 lanes/sublanes

    est = fixed + tb * per_row
    vmem_limit = int(min(max(est + (4 << 20), 16 << 20), 48 << 20))
    return tb, vmem_limit


# ----------------------------------------------------------------------------
# Wrapper
# ----------------------------------------------------------------------------
def discriminator_adult_aw(x, prepared, *, max_batch_tile=1024,
                           vmem_budget_bytes=16 << 20):
    """x: (B, input_length), f32 (or bf16 from the caller — no wrapper cast).
    `prepared`: output of prepare_params().  Returns softmax probs (B, 2) f32."""
    B, in_len = x.shape
    tb, vmem_limit = _pick_batch_tile(B, in_len, x.dtype, prepared["w1"].dtype,
                                      max_batch_tile, vmem_budget_bytes)

    xin = x
    if B < tb:  # only possible for B < 128; tiny pad, negligible HBM traffic
        xin = jnp.pad(x, ((0, tb - B), (0, 0)))
    nrows = xin.shape[0]

    grid = _cdiv(nrows, tb)          # last x block may be partial (masked read)
    bp = grid * tb                   # kernel-allocated output; padded cols cheap

    in_specs = [
        pl.BlockSpec((tb, in_len), lambda i: (i, 0)),       # x: tiled on batch
        pl.BlockSpec((in_len, DIM1), lambda i: (0, 0)),     # weights/biases:
        pl.BlockSpec((1, DIM1), lambda i: (0, 0)),          #   VMEM-resident
        pl.BlockSpec((DIM1, DIM1), lambda i: (0, 0)),
        pl.BlockSpec((1, DIM1), lambda i: (0, 0)),
        pl.BlockSpec((DIM1, DIM1), lambda i: (0, 0)),
        pl.BlockSpec((1, DIM1), lambda i: (0, 0)),
        pl.BlockSpec((1, DIM1), lambda i: (0, 0)),          # w_d row (f32)
        pl.BlockSpec((1, 1), lambda i: (0, 0)),             # b_d scalar
    ]
    # Class-major, lane-dense output: (2, batch) with batch on the lane axis.
    out_spec = pl.BlockSpec((NCLASS, tb), lambda i: (0, i))

    out = pl.pallas_call(
        _disc_kernel,
        out_shape=jax.ShapeDtypeStruct((NCLASS, bp), jnp.float32),
        grid_spec=pltpu.PrefetchScalarGridSpec(
            num_scalar_prefetch=0,
            grid=(grid,),
            in_specs=in_specs,
            out_specs=out_spec,
        ),
        compiler_params=pltpu.CompilerParams(
            dimension_semantics=("parallel",),    # megacore-shard batch tiles
            vmem_limit_bytes=vmem_limit,
        ),
    )(xin,
      prepared["w1"], prepared["b1"],
      prepared["w2"], prepared["b2"],
      prepared["w3"], prepared["b3"],
      prepared["wd"], prepared["bd"])

    # (2, bp) class-major -> caller layout (B, 2).
    return out[:, :B].T


# ----------------------------------------------------------------------------
# Synthetic params + pure-JAX reference (mirrors the PyTorch eval forward)
# ----------------------------------------------------------------------------
def init_params(key, input_length):
    ks = jax.random.split(key, 12)
    u = lambda k, shape, s=0.1: jax.random.uniform(k, shape, jnp.float32, -s, s)
    return {
        # Linear weights in PyTorch layout (out_features, in_features).
        "w1": u(ks[0], (DIM1, input_length)),
        "b1": u(ks[1], (DIM1,)),
        "w2": u(ks[2], (DIM2, DIM1)),
        "b2": u(ks[3], (DIM2,)),
        "w3": u(ks[4], (FINALDIM, DIM2)),
        "b3": u(ks[5], (FINALDIM,)),
        "w4": u(ks[6], (NCLASS, FINALDIM)),
        "b4": u(ks[7], (NCLASS,)),
        # BatchNorm1d(128) and BatchNorm1d(64): affine + running stats.
        "bn1_gamma": 1.0 + u(ks[8], (DIM1,)),
        "bn1_beta": u(ks[9], (DIM1,)),
        "bn1_mean": u(ks[10], (DIM1,)),
        "bn1_var": 1.0 + jnp.abs(u(ks[11], (DIM1,))),
        "bn2_gamma": 1.0 + u(ks[8], (DIM2,)),
        "bn2_beta": u(ks[9], (DIM2,)),
        "bn2_mean": u(ks[10], (DIM2,)),
        "bn2_var": 1.0 + jnp.abs(u(ks[11], (DIM2,))),
    }


def reference_forward(x, p):
    def bn(h, g, b, m, v):
        return (h - m) * (g / jnp.sqrt(v + BN_EPS)) + b

    h = jax.nn.relu(x @ p["w1"].T + p["b1"])
    h = bn(h, p["bn1_gamma"], p["bn1_beta"], p["bn1_mean"], p["bn1_var"])
    h = jax.nn.relu(h @ p["w2"].T + p["b2"])
    h = bn(h, p["bn2_gamma"], p["bn2_beta"], p["bn2_mean"], p["bn2_var"])
    h = jax.nn.relu(h @ p["w3"].T + p["b3"])
    h = bn(h, p["bn2_gamma"], p["bn2_beta"], p["bn2_mean"], p["bn2_var"])
    logits = h @ p["w4"].T + p["b4"]
    return jax.nn.softmax(logits, axis=1)


if __name__ == "__main__":
    key = jax.random.PRNGKey(0)
    k_x, k_p = jax.random.split(key)

    B, INPUT_LENGTH = 8, 32
    x = jax.random.normal(k_x, (B, INPUT_LENGTH), jnp.float32)
    params = init_params(k_p, INPUT_LENGTH)
    ref = reference_forward(x, params)

    # f32 path, single tile (small batch).
    prep32 = prepare_params(params, jnp.float32)
    out = jax.block_until_ready(discriminator_adult_aw(x, prep32))
    assert out.shape == (B, NCLASS)
    assert jnp.allclose(out, ref, atol=1e-4, rtol=1e-4), (out, ref)
    assert jnp.allclose(jnp.sum(out, axis=1), 1.0, atol=1e-5)

    # Ragged batch, default tiling (2 grid steps, partial last block — no pad).
    B2 = 300
    x2 = jax.random.normal(k_x, (B2, INPUT_LENGTH), jnp.float32)
    ref2 = reference_forward(x2, params)
    out2 = jax.block_until_ready(discriminator_adult_aw(x2, prep32))
    assert out2.shape == (B2, NCLASS)
    assert jnp.allclose(out2, ref2, atol=1e-4, rtol=1e-4), (out2, ref2)

    # Smaller tiles: 3 grid steps, partial last block.
    out3 = jax.block_until_ready(
        discriminator_adult_aw(x2, prep32, max_batch_tile=128))
    assert out3.shape == (B2, NCLASS)
    assert jnp.allclose(out3, ref2, atol=1e-4, rtol=1e-4), (out3, ref2)

    # bf16 matmul operands (MXU fast path), f32 accumulation + f32 epilogue.
    prep16 = prepare_params(params, jnp.bfloat16)
    out16 = jax.block_until_ready(
        discriminator_adult_aw(x2, prep16, max_batch_tile=128))
    assert out16.shape == (B2, NCLASS)
    assert jnp.allclose(out16, ref2, atol=5e-2, rtol=5e-2), (out16, ref2)

    print("KERNEL_OK")
</pallas_src>

<mosaic_0001>
module attributes {stable_mosaic.version = 11 : i64} {
  func.func @_disc_kernel(%arg0: i32, %arg1: memref<128x32xf32, #tpu.memory_space<vmem>>, %arg2: memref<32x128xf32, #tpu.memory_space<vmem>>, %arg3: memref<1x128xf32, #tpu.memory_space<vmem>>, %arg4: memref<128x128xf32, #tpu.memory_space<vmem>>, %arg5: memref<1x128xf32, #tpu.memory_space<vmem>>, %arg6: memref<128x128xf32, #tpu.memory_space<vmem>>, %arg7: memref<1x128xf32, #tpu.memory_space<vmem>>, %arg8: memref<1x128xf32, #tpu.memory_space<vmem>>, %arg9: memref<1x1xf32, #tpu.memory_space<vmem>>, %arg10: memref<2x128xf32, #tpu.memory_space<vmem>>) attributes {dimension_semantics = [#tpu.dimension_semantics<parallel>], iteration_bounds = array<i64: 1>, scalar_prefetch = 0 : i64, scratch_operands = 0 : i64, tpu.core_type = #tpu.core_type<tc>, window_params = [{transform_indices = @transform_0, window_bounds = array<i64: 128, 32>}, {pipeline_mode = #tpu.pipeline_mode<synchronous>, transform_indices = @transform_1, window_bounds = array<i64: 32, 128>}, {pipeline_mode = #tpu.pipeline_mode<synchronous>, transform_indices = @transform_2, window_bounds = array<i64: 1, 128>}, {pipeline_mode = #tpu.pipeline_mode<synchronous>, transform_indices = @transform_3, window_bounds = array<i64: 128, 128>}, {pipeline_mode = #tpu.pipeline_mode<synchronous>, transform_indices = @transform_4, window_bounds = array<i64: 1, 128>}, {pipeline_mode = #tpu.pipeline_mode<synchronous>, transform_indices = @transform_5, window_bounds = array<i64: 128, 128>}, {pipeline_mode = #tpu.pipeline_mode<synchronous>, transform_indices = @transform_6, window_bounds = array<i64: 1, 128>}, {pipeline_mode = #tpu.pipeline_mode<synchronous>, transform_indices = @transform_7, window_bounds = array<i64: 1, 128>}, {pipeline_mode = #tpu.pipeline_mode<synchronous>, transform_indices = @transform_8, window_bounds = array<i64: 1, 1>}, {transform_indices = @transform_9, window_bounds = array<i64: 2, 128>}]} {
    %c0 = arith.constant 0 : index
    %c0_0 = arith.constant 0 : index
    %0 = vector.load %arg1[%c0, %c0_0] : memref<128x32xf32, #tpu.memory_space<vmem>>, vector<128x32xf32>
    %c0_1 = arith.constant 0 : index
    %c0_2 = arith.constant 0 : index
    %1 = vector.load %arg2[%c0_1, %c0_2] : memref<32x128xf32, #tpu.memory_space<vmem>>, vector<32x128xf32>
    %cst = arith.constant dense<0.000000e+00> : vector<128x128xf32>
    %2 = tpu.matmul %0, %1, %cst {dimension_numbers = #tpu.dot_dimension_numbers<[1], [0], [0], [1], [0, 0, 1, 1], [], []>} : vector<128x32xf32>, vector<32x128xf32>, vector<128x128xf32> -> vector<128x128xf32>
    %c0_3 = arith.constant 0 : index
    %c0_4 = arith.constant 0 : index
    %3 = vector.load %arg3[%c0_3, %c0_4] : memref<1x128xf32, #tpu.memory_space<vmem>>, vector<1x128xf32>
    %4 = vector.broadcast %3 : vector<1x128xf32> to vector<128x128xf32>
    %5 = arith.addf %2, %4 : vector<128x128xf32>
    %cst_5 = arith.constant 0.000000e+00 : f32
    %6 = vector.broadcast %cst_5 : f32 to vector<128x128xf32>
    %7 = arith.maximumf %5, %6 : vector<128x128xf32>
    %c0_6 = arith.constant 0 : index
    %c0_7 = arith.constant 0 : index
    %8 = vector.load %arg4[%c0_6, %c0_7] : memref<128x128xf32, #tpu.memory_space<vmem>>, vector<128x128xf32>
    %cst_8 = arith.constant dense<0.000000e+00> : vector<128x128xf32>
    %9 = tpu.matmul %7, %8, %cst_8 {dimension_numbers = #tpu.dot_dimension_numbers<[1], [0], [0], [1], [0, 0, 1, 1], [], []>} : vector<128x128xf32>, vector<128x128xf32>, vector<128x128xf32> -> vector<128x128xf32>
    %c0_9 = arith.constant 0 : index
    %c0_10 = arith.constant 0 : index
    %10 = vector.load %arg5[%c0_9, %c0_10] : memref<1x128xf32, #tpu.memory_space<vmem>>, vector<1x128xf32>
    %11 = vector.broadcast %10 : vector<1x128xf32> to vector<128x128xf32>
    %12 = arith.addf %9, %11 : vector<128x128xf32>
    %cst_11 = arith.constant 0.000000e+00 : f32
    %13 = vector.broadcast %cst_11 : f32 to vector<128x128xf32>
    %14 = arith.maximumf %12, %13 : vector<128x128xf32>
    %c0_12 = arith.constant 0 : index
    %c0_13 = arith.constant 0 : index
    %15 = vector.load %arg6[%c0_12, %c0_13] : memref<128x128xf32, #tpu.memory_space<vmem>>, vector<128x128xf32>
    %cst_14 = arith.constant dense<0.000000e+00> : vector<128x128xf32>
    %16 = tpu.matmul %14, %15, %cst_14 {dimension_numbers = #tpu.dot_dimension_numbers<[1], [0], [0], [1], [0, 0, 1, 1], [], []>} : vector<128x128xf32>, vector<128x128xf32>, vector<128x128xf32> -> vector<128x128xf32>
    %c0_15 = arith.constant 0 : index
    %c0_16 = arith.constant 0 : index
    %17 = vector.load %arg7[%c0_15, %c0_16] : memref<1x128xf32, #tpu.memory_space<vmem>>, vector<1x128xf32>
    %18 = vector.broadcast %17 : vector<1x128xf32> to vector<128x128xf32>
    %19 = arith.addf %16, %18 : vector<128x128xf32>
    %cst_17 = arith.constant 0.000000e+00 : f32
    %20 = vector.broadcast %cst_17 : f32 to vector<128x128xf32>
    %21 = arith.maximumf %19, %20 : vector<128x128xf32>
    %c0_18 = arith.constant 0 : index
    %c0_19 = arith.constant 0 : index
    %22 = vector.load %arg8[%c0_18, %c0_19] : memref<1x128xf32, #tpu.memory_space<vmem>>, vector<1x128xf32>
    %23 = tpu.transpose %21, [1, 0] : vector<128x128xf32> -> vector<128x128xf32>
    %cst_20 = arith.constant dense<0.000000e+00> : vector<1x128xf32>
    %24 = tpu.matmul %22, %23, %cst_20 {dimension_numbers = #tpu.dot_dimension_numbers<[1], [0], [0], [1], [0, 0, 1, 1], [], []>} : vector<1x128xf32>, vector<128x128xf32>, vector<1x128xf32> -> vector<1x128xf32>
    %c0_21 = arith.constant 0 : index
    %c0_22 = arith.constant 0 : index
    %25 = vector.load %arg9[%c0_21, %c0_22] : memref<1x1xf32, #tpu.memory_space<vmem>>, vector<1x1xf32>
    %26 = vector.broadcast %25 : vector<1x1xf32> to vector<1x128xf32>
    %27 = arith.addf %24, %26 : vector<1x128xf32>
    %cst_23 = arith.constant 0.000000e+00 : f32
    %28 = vector.broadcast %cst_23 : f32 to vector<1x128xf32>
    %29 = arith.subf %28, %27 : vector<1x128xf32>
    %30 = math.exp %29 : vector<1x128xf32>
    %cst_24 = arith.constant 1.000000e+00 : f32
    %31 = vector.broadcast %cst_24 : f32 to vector<1x128xf32>
    %32 = arith.addf %31, %30 : vector<1x128xf32>
    %cst_25 = arith.constant 1.000000e+00 : f32
    %33 = vector.broadcast %cst_25 : f32 to vector<1x128xf32>
    %34 = arith.divf %33, %32 : vector<1x128xf32>
    %cst_26 = arith.constant 1.000000e+00 : f32
    %35 = vector.broadcast %cst_26 : f32 to vector<1x128xf32>
    %36 = arith.subf %35, %34 : vector<1x128xf32>
    %37 = tpu.concatenate %36, %34 in 0 : vector<1x128xf32>, vector<1x128xf32> -> vector<2x128xf32>
    %c0_27 = arith.constant 0 : index
    %c0_28 = arith.constant 0 : index
    %38 = vector.load %arg10[%c0_27, %c0_28] : memref<2x128xf32, #tpu.memory_space<vmem>>, vector<2x128xf32>
    tpu.vector_store %arg10[%c0_27, %c0_28], %37 {strides = array<i32>} : memref<2x128xf32, #tpu.memory_space<vmem>>, vector<2x128xf32>,
    return
  }
  func.func @transform_0(%arg0: i32) -> (i32, i32) {
    %c0_i32 = arith.constant 0 : i32
    %c0_i32_0 = arith.constant 0 : i32
    return %arg0, %c0_i32 : i32, i32
  }
  func.func @transform_1(%arg0: i32) -> (i32, i32) {
    %c0_i32 = arith.constant 0 : i32
    %c0_i32_0 = arith.constant 0 : i32
    %c0_i32_1 = arith.constant 0 : i32
    return %c0_i32, %c0_i32_0 : i32, i32
  }
  func.func @transform_2(%arg0: i32) -> (i32, i32) {
    %c0_i32 = arith.constant 0 : i32
    %c0_i32_0 = arith.constant 0 : i32
    %c0_i32_1 = arith.constant 0 : i32
    return %c0_i32, %c0_i32_0 : i32, i32
  }
  func.func @transform_3(%arg0: i32) -> (i32, i32) {
    %c0_i32 = arith.constant 0 : i32
    %c0_i32_0 = arith.constant 0 : i32
    %c0_i32_1 = arith.constant 0 : i32
    return %c0_i32, %c0_i32_0 : i32, i32
  }
  func.func @transform_4(%arg0: i32) -> (i32, i32) {
    %c0_i32 = arith.constant 0 : i32
    %c0_i32_0 = arith.constant 0 : i32
    %c0_i32_1 = arith.constant 0 : i32
    return %c0_i32, %c0_i32_0 : i32, i32
  }
  func.func @transform_5(%arg0: i32) -> (i32, i32) {
    %c0_i32 = arith.constant 0 : i32
    %c0_i32_0 = arith.constant 0 : i32
    %c0_i32_1 = arith.constant 0 : i32
    return %c0_i32, %c0_i32_0 : i32, i32
  }
  func.func @transform_6(%arg0: i32) -> (i32, i32) {
    %c0_i32 = arith.constant 0 : i32
    %c0_i32_0 = arith.constant 0 : i32
    %c0_i32_1 = arith.constant 0 : i32
    return %c0_i32, %c0_i32_0 : i32, i32
  }
  func.func @transform_7(%arg0: i32) -> (i32, i32) {
    %c0_i32 = arith.constant 0 : i32
    %c0_i32_0 = arith.constant 0 : i32
    %c0_i32_1 = arith.constant 0 : i32
    return %c0_i32, %c0_i32_0 : i32, i32
  }
  func.func @transform_8(%arg0: i32) -> (i32, i32) {
    %c0_i32 = arith.constant 0 : i32
    %c0_i32_0 = arith.constant 0 : i32
    %c0_i32_1 = arith.constant 0 : i32
    return %c0_i32, %c0_i32_0 : i32, i32
  }
  func.func @transform_9(%arg0: i32) -> (i32, i32) {
    %c0_i32 = arith.constant 0 : i32
    %c0_i32_0 = arith.constant 0 : i32
    return %c0_i32, %arg0 : i32, i32
  }
}

</mosaic_0001>

<llo_original>
// kernel: tpu_custom_call.1
$region0: #{tpu_custom_call.1}
  #allocation0 [shape = 'u32[]', space=smem, size = 0x4, offset = 0x4, fixed_abs, tag = 'smem constant byte address 0x4 - core index']
  #allocation1 [shape = 'u32[72,128]{1,0:T(1,128)}', space=vmem, size = 0x9000, scoped, tag = 'internal scratch']
  #allocation2 [shape = 'f32[1,1]{1,0:T(1,128)S(1)}', space=vmem, size = 0x200, scoped, tag = 'scoped memory for tpu_custom_call.1']
  %s0 = inlined_call_operand.vmem [shape: f32[128,32], index: 0, kind: input, shape index: {}]
  %s1 = inlined_call_operand.vmem [shape: f32[32,128], index: 1, kind: input, shape index: {}]
  %s2 = inlined_call_operand.vmem [shape: f32[1,128], index: 2, kind: input, shape index: {}]
  %s3 = inlined_call_operand.vmem [shape: f32[128,128], index: 3, kind: input, shape index: {}]
  %s4 = inlined_call_operand.vmem [shape: f32[1,128], index: 4, kind: input, shape index: {}]
  %s5 = inlined_call_operand.hbm [shape: f32[128,128], index: 5, kind: input, shape index: {}]
  %s6 = inlined_call_operand.vmem [shape: f32[1,128], index: 6, kind: input, shape index: {}]
  %s7 = inlined_call_operand.vmem [shape: f32[1,128], index: 7, kind: input, shape index: {}]
  %s8 = inlined_call_operand.<no memory space> [shape: f32[1,1], index: 8, kind: input, shape index: {}]
  %s9 = inlined_call_operand.hbm [shape: f32[2,128], index: 9, kind: output, shape index: {}]
  %s10 = sld [smem:[#allocation0]]
  $region50: #{tpu_custom_call.1} parent=0
    _
  %s12 = ssub.s32 1, %s10
  %s13 = scalar_select 0, %s12, %s10
  %v14 = vstv %s8
  %15 = vst [vmem:[#allocation2] sm:$0x1] %v14
  $region1: #{tpu_custom_call.1} parent=0
    #allocation3 [shape = 'u8[65536]{0}', space=vmem, size = 0x10000, scoped, tag = 'input window, operand 5, single buffered']
    #allocation4 [shape = 's32[1]{0}', space=sflag, size = 0x4, scoped, tag = 'scoped memory for tpu_custom_call.1']
    #allocation5 [shape = 's32[1]{0}', space=sflag, size = 0x4, scoped, tag = 'scoped memory for tpu_custom_call.1']
    #allocation6 [shape = 'u8[1024]{0}', space=vmem, size = 0x400, scoped, tag = 'output window, operand 0, single buffered']
    %16 = vsyncpa [#allocation4], 0
    %17 = vsyncpa [#allocation5], 0
    // Predicated region
    $region2: #{tpu_custom_call.1} parent=1 // pred_check
      _
    $region3: #{tpu_custom_call.1} parent=1 // pred_check_branch
      %19 = sbr.rel (0) target = $region5
    $region4: #{tpu_custom_call.1} parent=1 // pred_region
      _
    $region5: #{tpu_custom_call.1} parent=1 // pred_fallthru
      _
    // Predicated region
    $region6: #{tpu_custom_call.1} parent=1 // pred_check
      _
    $region7: #{tpu_custom_call.1} parent=1 // pred_check_branch
      %21 = sbr.rel (0) target = $region9
    $region8: #{tpu_custom_call.1} parent=1 // pred_region
      _
    $region9: #{tpu_custom_call.1} parent=1 // pred_fallthru
      _
    // Predicated region
    $region10: #{tpu_custom_call.1} parent=1 // pred_check
      _
    $region11: #{tpu_custom_call.1} parent=1 // pred_check_branch
      %23 = sbr.rel (0) target = $region13
    $region12: #{tpu_custom_call.1} parent=1 // pred_region
      _
    $region13: #{tpu_custom_call.1} parent=1 // pred_fallthru
      _
    // Predicated region
    $region14: #{tpu_custom_call.1} parent=1 // pred_check
      _
    $region15: #{tpu_custom_call.1} parent=1 // pred_check_branch
      %25 = sbr.rel (0) target = $region17
    $region16: #{tpu_custom_call.1} parent=1 // pred_region
      _
    $region17: #{tpu_custom_call.1} parent=1 // pred_fallthru
      _
    // Predicated region
    $region18: #{tpu_custom_call.1} parent=1 // pred_check
      _
    $region19: #{tpu_custom_call.1} parent=1 // pred_check_branch
      %27 = sbr.rel (0) target = $region21
    $region20: #{tpu_custom_call.1} parent=1 // pred_region
      _
    $region21: #{tpu_custom_call.1} parent=1 // pred_fallthru
      _
    // Predicated region
    $region22: #{tpu_custom_call.1} parent=1 // pred_check
      _
    $region23: #{tpu_custom_call.1} parent=1 // pred_check_branch
      %29 = sbr.rel (0) target = $region25
    $region24: #{tpu_custom_call.1} parent=1 // pred_region
      %31 = vsyncadd [#allocation4], 0
      %s32 = sshll.u32 %s5, 4
      %s33 = int_to_ptr.hbm [resolvable:$true] %s32
      %s34 = sshll.u32 [#allocation3], 4
      %s35 = int_to_ptr.vmem [resolvable:$true] %s34
      %40 = dma.hbm_to_vmem [thread:$0]  %s33, 2048, %s35, [#allocation4], 128, 128, 8
    $region25: #{tpu_custom_call.1} parent=1 // pred_fallthru
      _
    // Predicated region
    $region26: #{tpu_custom_call.1} parent=1 // pred_check
      _
    $region27: #{tpu_custom_call.1} parent=1 // pred_check_branch
      %42 = sbr.rel (0) target = $region29
    $region28: #{tpu_custom_call.1} parent=1 // pred_region
      _
    $region29: #{tpu_custom_call.1} parent=1 // pred_fallthru
      _
    // Predicated region
    $region30: #{tpu_custom_call.1} parent=1 // pred_check
      _
    $region31: #{tpu_custom_call.1} parent=1 // pred_check_branch
      %44 = sbr.rel (0) target = $region33
    $region32: #{tpu_custom_call.1} parent=1 // pred_region
      _
    $region33: #{tpu_custom_call.1} parent=1 // pred_fallthru
      _
    // Predicated region
    $region34: #{tpu_custom_call.1} parent=1 // pred_check
      _
    $region35: #{tpu_custom_call.1} parent=1 // pred_check_branch
      %46 = sbr.rel (0) target = $region37
    $region36: #{tpu_custom_call.1} parent=1 // pred_region
      _
    $region37: #{tpu_custom_call.1} parent=1 // pred_fallthru
      _
    // Predicated region
    $region38: #{tpu_custom_call.1} parent=1 // pred_check
      _
    $region39: #{tpu_custom_call.1} parent=1 // pred_check_branch
      %48 = sbr.rel (0) target = $region41
    $region40: #{tpu_custom_call.1} parent=1 // pred_region
      %50 = dma.done [#allocation4], 2048
    $region41: #{tpu_custom_call.1} parent=1 // pred_fallthru
      _
    %v51 = vld [vmem:[%s0] sm:$0xff]
    %v52 = vld [vmem:[%s0 + $0x8] sm:$0xff]
    %v53 = vld [vmem:[%s0 + $0x10] sm:$0xff]
    %v54 = vld [vmem:[%s0 + $0x18] sm:$0xff]
    %v55 = vld [vmem:[%s0 + $0x20] sm:$0xff]
    %v56 = vld [vmem:[%s0 + $0x28] sm:$0xff]
    %v57 = vld [vmem:[%s0 + $0x30] sm:$0xff]
    %v58 = vld [vmem:[%s0 + $0x38] sm:$0xff]
    %v59 = vld [vmem:[%s0 + $0x40] sm:$0xff]
    %v60 = vld [vmem:[%s0 + $0x48] sm:$0xff]
    %v61 = vld [vmem:[%s0 + $0x50] sm:$0xff]
    %v62 = vld [vmem:[%s0 + $0x58] sm:$0xff]
    %v63 = vld [vmem:[%s0 + $0x60] sm:$0xff]
    %v64 = vld [vmem:[%s0 + $0x68] sm:$0xff]
    %v65 = vld [vmem:[%s0 + $0x70] sm:$0xff]
    %v66 = vld [vmem:[%s0 + $0x78] sm:$0xff]
    %v67 = vld [vmem:[%s1] sm:$0xff]
    %v68 = vld [vmem:[%s1 + $0x8] sm:$0xff]
    %v69 = vld [vmem:[%s1 + $0x10] sm:$0xff]
    %v70 = vld [vmem:[%s1 + $0x18] sm:$0xff]
    %v71 = vld [vmem:[%s2] sm:$0x1]
    %v73 = vperm.slane %v71, 0
    %vm75 = vcmask 261120
    %v77 = vsel %vm75, %v51, 0
    %v80 = vsel %vm75, %v52, 0
    %v83 = vsel %vm75, %v53, 0
    %v86 = vsel %vm75, %v54, 0
    %v89 = vsel %vm75, %v55, 0
    %v92 = vsel %vm75, %v56, 0
    %v95 = vsel %vm75, %v57, 0
    %v98 = vsel %vm75, %v58, 0
    %v101 = vsel %vm75, %v59, 0
    %v104 = vsel %vm75, %v60, 0
    %v107 = vsel %vm75, %v61, 0
    %v110 = vsel %vm75, %v62, 0
    %v113 = vsel %vm75, %v63, 0
    %v116 = vsel %vm75, %v64, 0
    %v119 = vsel %vm75, %v65, 0
    %v122 = vsel %vm75, %v66, 0
    %124 = vmatpush.msra.mxu0 0.0
    %125 = vmatpush.msra.mxu0 0.0
    %126 = vmatpush.msra.mxu0 0.0
    %127 = vmatpush.msra.mxu0 0.0
    %128 = vmatpush.msra.mxu0 0.0
    %129 = vmatpush.msra.mxu0 0.0
    %130 = vmatpush.msra.mxu0 0.0
    %131 = vmatpush.msra.mxu0 0.0
    %132 = vmatpush.msra.mxu0 0.0
    %133 = vmatpush.msra.mxu0 0.0
    %134 = vmatpush.msra.mxu0 0.0
    %135 = vmatpush.msra.mxu0 0.0
    %136 = vmatpush.msra.mxu0 %v70
    %137 = vmatpush.msra.mxu0 %v69
    %138 = vmatpush.msra.mxu0 %v68
    %139 = vmatpush.msra.mxu0 %v67
    %140 = vmatmul.f32.gmra.mxu0 %v77
    %v141 = vpop.f32.mrf.mxu0
    %v142 = vadd.f32 %v73, %v141
    %143 = vmatmul.f32.gmra.mxu0 %v80
    %v144 = vpop.f32.mrf.mxu0
    %v145 = vadd.f32 %v73, %v144
    %146 = vmatmul.f32.gmra.mxu0 %v83
    %v147 = vpop.f32.mrf.mxu0
    %v148 = vadd.f32 %v73, %v147
    %149 = vmatmul.f32.gmra.mxu0 %v86
    %v150 = vpop.f32.mrf.mxu0
    %v151 = vadd.f32 %v73, %v150
    %152 = vmatmul.f32.gmra.mxu0 %v89
    %v153 = vpop.f32.mrf.mxu0
    %v154 = vadd.f32 %v73, %v153
    %155 = vmatmul.f32.gmra.mxu0 %v92
    %v156 = vpop.f32.mrf.mxu0
    %v157 = vadd.f32 %v73, %v156
    %158 = vmatmul.f32.gmra.mxu0 %v95
    %v159 = vpop.f32.mrf.mxu0
    %v160 = vadd.f32 %v73, %v159
    %161 = vmatmul.f32.gmra.mxu0 %v98
    %v162 = vpop.f32.mrf.mxu0
    %v163 = vadd.f32 %v73, %v162
    %164 = vmatmul.f32.gmra.mxu0 %v101
    %v165 = vpop.f32.mrf.mxu0
    %v166 = vadd.f32 %v73, %v165
    %167 = vmatmul.f32.gmra.mxu0 %v104
    %v168 = vpop.f32.mrf.mxu0
    %v169 = vadd.f32 %v73, %v168
    %170 = vmatmul.f32.gmra.mxu0 %v107
    %v171 = vpop.f32.mrf.mxu0
    %v172 = vadd.f32 %v73, %v171
    %173 = vmatmul.f32.gmra.mxu0 %v110
    %v174 = vpop.f32.mrf.mxu0
    %v175 = vadd.f32 %v73, %v174
    %176 = vmatmul.f32.gmra.mxu0 %v113
    %v177 = vpop.f32.mrf.mxu0
    %v178 = vadd.f32 %v73, %v177
    %179 = vmatmul.f32.gmra.mxu0 %v116
    %v180 = vpop.f32.mrf.mxu0
    %v181 = vadd.f32 %v73, %v180
    %182 = vmatmul.f32.gmra.mxu0 %v119
    %v183 = vpop.f32.mrf.mxu0
    %v184 = vadd.f32 %v73, %v183
    %185 = vmatmul.f32.gmra.mxu0 %v122
    %v186 = vpop.f32.mrf.mxu0
    %v187 = vadd.f32 %v73, %v186
    %188 = vdwg.mxu0
    %v189 = vmax.f32 %v142, 0.0
    %v190 = vmax.f32 %v145, 0.0
    %v191 = vmax.f32 %v148, 0.0
    %v192 = vmax.f32 %v151, 0.0
    %v193 = vmax.f32 %v154, 0.0
    %v194 = vmax.f32 %v157, 0.0
    %v195 = vmax.f32 %v160, 0.0
    %v196 = vmax.f32 %v163, 0.0
    %v197 = vmax.f32 %v166, 0.0
    %v198 = vmax.f32 %v169, 0.0
    %v199 = vmax.f32 %v172, 0.0
    %v200 = vmax.f32 %v175, 0.0
    %v201 = vmax.f32 %v178, 0.0
    %v202 = vmax.f32 %v181, 0.0
    %v203 = vmax.f32 %v184, 0.0
    %v204 = vmax.f32 %v187, 0.0
    %v205 = vld [vmem:[%s3] sm:$0xff]
    %v206 = vld [vmem:[%s3 + $0x8] sm:$0xff]
    %v207 = vld [vmem:[%s3 + $0x10] sm:$0xff]
    %v208 = vld [vmem:[%s3 + $0x18] sm:$0xff]
    %v209 = vld [vmem:[%s3 + $0x20] sm:$0xff]
    %v210 = vld [vmem:[%s3 + $0x28] sm:$0xff]
    %v211 = vld [vmem:[%s3 + $0x30] sm:$0xff]
    %v212 = vld [vmem:[%s3 + $0x38] sm:$0xff]
    %v213 = vld [vmem:[%s3 + $0x40] sm:$0xff]
    %v214 = vld [vmem:[%s3 + $0x48] sm:$0xff]
    %v215 = vld [vmem:[%s3 + $0x50] sm:$0xff]
    %v216 = vld [vmem:[%s3 + $0x58] sm:$0xff]
    %v217 = vld [vmem:[%s3 + $0x60] sm:$0xff]
    %v218 = vld [vmem:[%s3 + $0x68] sm:$0xff]
    %v219 = vld [vmem:[%s3 + $0x70] sm:$0xff]
    %v220 = vld [vmem:[%s3 + $0x78] sm:$0xff]
    %v221 = vld [vmem:[%s4] sm:$0x1]
    %v223 = vperm.slane %v221, 0
    %225 = vmatpush.msra.mxu0 %v220
    %226 = vmatpush.msra.mxu0 %v219
    %227 = vmatpush.msra.mxu0 %v218
    %228 = vmatpush.msra.mxu0 %v217
    %229 = vmatpush.msra.mxu0 %v216
    %230 = vmatpush.msra.mxu0 %v215
    %231 = vmatpush.msra.mxu0 %v214
    %232 = vmatpush.msra.mxu0 %v213
    %233 = vmatpush.msra.mxu0 %v212
    %234 = vmatpush.msra.mxu0 %v211
    %235 = vmatpush.msra.mxu0 %v210
    %236 = vmatpush.msra.mxu0 %v209
    %237 = vmatpush.msra.mxu0 %v208
    %238 = vmatpush.msra.mxu0 %v207
    %239 = vmatpush.msra.mxu0 %v206
    %240 = vmatpush.msra.mxu0 %v205
    %241 = vmatmul.f32.gmra.mxu0 %v189
    %v242 = vpop.f32.mrf.mxu0
    %v243 = vadd.f32 %v223, %v242
    %244 = vmatmul.f32.gmra.mxu0 %v190
    %v245 = vpop.f32.mrf.mxu0
    %v246 = vadd.f32 %v223, %v245
    %247 = vmatmul.f32.gmra.mxu0 %v191
    %v248 = vpop.f32.mrf.mxu0
    %v249 = vadd.f32 %v223, %v248
    %250 = vmatmul.f32.gmra.mxu0 %v192
    %v251 = vpop.f32.mrf.mxu0
    %v252 = vadd.f32 %v223, %v251
    %253 = vmatmul.f32.gmra.mxu0 %v193
    %v254 = vpop.f32.mrf.mxu0
    %v255 = vadd.f32 %v223, %v254
    %256 = vmatmul.f32.gmra.mxu0 %v194
    %v257 = vpop.f32.mrf.mxu0
    %v258 = vadd.f32 %v223, %v257
    %259 = vmatmul.f32.gmra.mxu0 %v195
    %v260 = vpop.f32.mrf.mxu0
    %v261 = vadd.f32 %v223, %v260
    %262 = vmatmul.f32.gmra.mxu0 %v196
    %v263 = vpop.f32.mrf.mxu0
    %v264 = vadd.f32 %v223, %v263
    %265 = vmatmul.f32.gmra.mxu0 %v197
    %v266 = vpop.f32.mrf.mxu0
    %v267 = vadd.f32 %v223, %v266
    %268 = vmatmul.f32.gmra.mxu0 %v198
    %v269 = vpop.f32.mrf.mxu0
    %v270 = vadd.f32 %v223, %v269
    %271 = vmatmul.f32.gmra.mxu0 %v199
    %v272 = vpop.f32.mrf.mxu0
    %v273 = vadd.f32 %v223, %v272
    %274 = vmatmul.f32.gmra.mxu0 %v200
    %v275 = vpop.f32.mrf.mxu0
    %v276 = vadd.f32 %v223, %v275
    %277 = vmatmul.f32.gmra.mxu0 %v201
    %v278 = vpop.f32.mrf.mxu0
    %v279 = vadd.f32 %v223, %v278
    %280 = vmatmul.f32.gmra.mxu0 %v202
    %v281 = vpop.f32.mrf.mxu0
    %v282 = vadd.f32 %v223, %v281
    %283 = vmatmul.f32.gmra.mxu0 %v203
    %v284 = vpop.f32.mrf.mxu0
    %v285 = vadd.f32 %v223, %v284
    %286 = vmatmul.f32.gmra.mxu0 %v204
    %v287 = vpop.f32.mrf.mxu0
    %v288 = vadd.f32 %v223, %v287
    %289 = vdwg.mxu0
    %v290 = vmax.f32 %v243, 0.0
    %v291 = vmax.f32 %v246, 0.0
    %v292 = vmax.f32 %v249, 0.0
    %v293 = vmax.f32 %v252, 0.0
    %v294 = vmax.f32 %v255, 0.0
    %v295 = vmax.f32 %v258, 0.0
    %v296 = vmax.f32 %v261, 0.0
    %v297 = vmax.f32 %v264, 0.0
    %v298 = vmax.f32 %v267, 0.0
    %v299 = vmax.f32 %v270, 0.0
    %v300 = vmax.f32 %v273, 0.0
    %v301 = vmax.f32 %v276, 0.0
    %v302 = vmax.f32 %v279, 0.0
    %v303 = vmax.f32 %v282, 0.0
    %v304 = vmax.f32 %v285, 0.0
    %v305 = vmax.f32 %v288, 0.0
    %v306 = vld [vmem:[#allocation3] sm:$0xff]
    %v307 = vld [vmem:[#allocation3 + $0x8] sm:$0xff]
    %v308 = vld [vmem:[#allocation3 + $0x10] sm:$0xff]
    %v309 = vld [vmem:[#allocation3 + $0x18] sm:$0xff]
    %v310 = vld [vmem:[#allocation3 + $0x20] sm:$0xff]
    %v311 = vld [vmem:[#allocation3 + $0x28] sm:$0xff]
    %v312 = vld [vmem:[#allocation3 + $0x30] sm:$0xff]
    %v313 = vld [vmem:[#allocation3 + $0x38] sm:$0xff]
    %v314 = vld [vmem:[#allocation3 + $0x40] sm:$0xff]
    %v315 = vld [vmem:[#allocation3 + $0x48] sm:$0xff]
    %v316 = vld [vmem:[#allocation3 + $0x50] sm:$0xff]
    %v317 = vld [vmem:[#allocation3 + $0x58] sm:$0xff]
    %v318 = vld [vmem:[#allocation3 + $0x60] sm:$0xff]
    %v319 = vld [vmem:[#allocation3 + $0x68] sm:$0xff]
    %v320 = vld [vmem:[#allocation3 + $0x70] sm:$0xff]
    %v321 = vld [vmem:[#allocation3 + $0x78] sm:$0xff]
    %v322 = vld [vmem:[%s6] sm:$0x1]
    %v324 = vperm.slane %v322, 0
    %326 = vmatpush.msra.mxu0 %v321
    %327 = vmatpush.msra.mxu0 %v320
    %328 = vmatpush.msra.mxu0 %v319
    %329 = vmatpush.msra.mxu0 %v318
    %330 = vmatpush.msra.mxu0 %v317
    %331 = vmatpush.msra.mxu0 %v316
    %332 = vmatpush.msra.mxu0 %v315
    %333 = vmatpush.msra.mxu0 %v314
    %334 = vmatpush.msra.mxu0 %v313
    %335 = vmatpush.msra.mxu0 %v312
    %336 = vmatpush.msra.mxu0 %v311
    %337 = vmatpush.msra.mxu0 %v310
    %338 = vmatpush.msra.mxu0 %v309
    %339 = vmatpush.msra.mxu0 %v308
    %340 = vmatpush.msra.mxu0 %v307
    %341 = vmatpush.msra.mxu0 %v306
    %342 = vmatmul.f32.gmra.mxu0 %v290
    %v343 = vpop.f32.mrf.mxu0
    %v344 = vadd.f32 %v324, %v343
    %345 = vmatmul.f32.gmra.mxu0 %v291
    %v346 = vpop.f32.mrf.mxu0
    %v347 = vadd.f32 %v324, %v346
    %348 = vmatmul.f32.gmra.mxu0 %v292
    %v349 = vpop.f32.mrf.mxu0
    %v350 = vadd.f32 %v324, %v349
    %351 = vmatmul.f32.gmra.mxu0 %v293
    %v352 = vpop.f32.mrf.mxu0
    %v353 = vadd.f32 %v324, %v352
    %354 = vmatmul.f32.gmra.mxu0 %v294
    %v355 = vpop.f32.mrf.mxu0
    %v356 = vadd.f32 %v324, %v355
    %357 = vmatmul.f32.gmra.mxu0 %v295
    %v358 = vpop.f32.mrf.mxu0
    %v359 = vadd.f32 %v324, %v358
    %360 = vmatmul.f32.gmra.mxu0 %v296
    %v361 = vpop.f32.mrf.mxu0
    %v362 = vadd.f32 %v324, %v361
    %363 = vmatmul.f32.gmra.mxu0 %v297
    %v364 = vpop.f32.mrf.mxu0
    %v365 = vadd.f32 %v324, %v364
    %366 = vmatmul.f32.gmra.mxu0 %v298
    %v367 = vpop.f32.mrf.mxu0
    %v368 = vadd.f32 %v324, %v367
    %369 = vmatmul.f32.gmra.mxu0 %v299
    %v370 = vpop.f32.mrf.mxu0
    %v371 = vadd.f32 %v324, %v370
    %372 = vmatmul.f32.gmra.mxu0 %v300
    %v373 = vpop.f32.mrf.mxu0
    %v374 = vadd.f32 %v324, %v373
    %375 = vmatmul.f32.gmra.mxu0 %v301
    %v376 = vpop.f32.mrf.mxu0
    %v377 = vadd.f32 %v324, %v376
    %378 = vmatmul.f32.gmra.mxu0 %v302
    %v379 = vpop.f32.mrf.mxu0
    %v380 = vadd.f32 %v324, %v379
    %381 = vmatmul.f32.gmra.mxu0 %v303
    %v382 = vpop.f32.mrf.mxu0
    %v383 = vadd.f32 %v324, %v382
    %384 = vmatmul.f32.gmra.mxu0 %v304
    %v385 = vpop.f32.mrf.mxu0
    %v386 = vadd.f32 %v324, %v385
    %387 = vmatmul.f32.gmra.mxu0 %v305
    %v388 = vpop.f32.mrf.mxu0
    %v389 = vadd.f32 %v324, %v388
    %390 = vdwg.mxu0
    %v391 = vmax.f32 %v344, 0.0
    %v392 = vmax.f32 %v347, 0.0
    %v393 = vmax.f32 %v350, 0.0
    %v394 = vmax.f32 %v353, 0.0
    %v395 = vmax.f32 %v356, 0.0
    %v396 = vmax.f32 %v359, 0.0
    %v397 = vmax.f32 %v362, 0.0
    %v398 = vmax.f32 %v365, 0.0
    %v399 = vmax.f32 %v368, 0.0
    %v400 = vmax.f32 %v371, 0.0
    %v401 = vmax.f32 %v374, 0.0
    %v402 = vmax.f32 %v377, 0.0
    %v403 = vmax.f32 %v380, 0.0
    %v404 = vmax.f32 %v383, 0.0
    %v405 = vmax.f32 %v386, 0.0
    %v406 = vmax.f32 %v389, 0.0
    %v407 = vld [vmem:[%s7] sm:$0x1]
    %v408 = vld [vmem:[#allocation2] sm:$0x1]
    %410 = vset.pattern.permute.xlu0 0
    %411 = vperm.xlu0 %410, %v408
    %v412 = vpop.permute.xlu0 %411
    %v414 = vperm.slane %v412, 0
    %415 = vmatpush.xpose.msra.mxu0 %v406
    %416 = vmatpush.xpose.msra.mxu0 %v405
    %417 = vmatpush.xpose.msra.mxu0 %v404
    %418 = vmatpush.xpose.msra.mxu0 %v403
    %419 = vmatpush.xpose.msra.mxu0 %v402
    %420 = vmatpush.xpose.msra.mxu0 %v401
    %421 = vmatpush.xpose.msra.mxu0 %v400
    %422 = vmatpush.xpose.msra.mxu0 %v399
    %423 = vmatpush.xpose.msra.mxu0 %v398
    %424 = vmatpush.xpose.msra.mxu0 %v397
    %425 = vmatpush.xpose.msra.mxu0 %v396
    %426 = vmatpush.xpose.msra.mxu0 %v395
    %427 = vmatpush.xpose.msra.mxu0 %v394
    %428 = vmatpush.xpose.msra.mxu0 %v393
    %429 = vmatpush.xpose.msra.mxu0 %v392
    %430 = vmatpush.xpose.msra.mxu0 %v391
    %431 = vmatmul.f32.gmra.mxu0 %v407
    %v432 = vpop.f32.mrf.mxu0
    %v433 = vadd.f32 %v414, %v432
    %434 = vdwg.mxu0
    %v435 = vsub.f32 0.0, %v433
    %v436 = vmul.f32 %v435, 1.442695
    %v437 = vpow.pop %v436
    %v438 = vadd.f32 %v437, 1.0
    %v439 = vrcp.pop %v438
    %v440 = vmul.f32 %v438, %v439
    %v441 = vsub.f32 1.0, %v440
    %v442 = vmul.f32 %v439, %v441
    %v443 = vadd.f32 %v439, %v442
    %vm444 = vweird.f32 %v438
    %vm445 = vweird.f32 %v439
    %vm446 = vmor %vm444, %vm445
    %v447 = vsel %vm446, %v439, %v443
    %v448 = vand.u32 2147483647, %v438
    %vm449 = vcmp.eq.f32.partialorder %v448, 8.507059e+37
    %v450 = vand.u32 %v438, 2147483648
    %v451 = vor.u32 1.1754944e-38, %v450
    %v452 = vsel %vm449, %v451, %v447
    %v453 = vmul.f32 1.0, %v452
    %v454 = vsub.f32 1.0, %v453
    %v456 = vrot.slane %v453, 7
    %vm458 = vcmask 1040384
    %v459 = vsel %vm458, %v454, %v456
    %460 = vst [vmem:[#allocation6] sm:$0x3] %v459
    // Predicated region
    $region42: #{tpu_custom_call.1} parent=1 // pred_check
      _
    $region43: #{tpu_custom_call.1} parent=1 // pred_check_branch
      %462 = sbr.rel (0) target = $region45
    $region44: #{tpu_custom_call.1} parent=1 // pred_region
      %464 = vsyncadd [#allocation5], 0
      %s466 = sshll.u32 [#allocation6], 4
      %s467 = int_to_ptr.vmem [resolvable:$true] %s466
      %s468 = sshll.u32 %s9, 4
      %s469 = int_to_ptr.hbm [resolvable:$true] %s468
      %471 = dma.vmem_to_hbm [thread:$0]  %s467, 32, %s469, [#allocation5]
    $region45: #{tpu_custom_call.1} parent=1 // pred_fallthru
      _
    // Predicated region
    $region46: #{tpu_custom_call.1} parent=1 // pred_check
      _
    $region47: #{tpu_custom_call.1} parent=1 // pred_check_branch
      %473 = sbr.rel (0) target = $region49
    $region48: #{tpu_custom_call.1} parent=1 // pred_region
      %475 = dma.done [#allocation5], 32
    $region49: #{tpu_custom_call.1} parent=1 // pred_fallthru
      _
    %476 = vsyncpa [#allocation4], 1
    %477 = vsyncpa [#allocation5], 1

</llo_original>
